<compile_context>
chip_gen: v7x
topology: tpu7x:2x2x1
jax: 0.10.0
libtpu: 0.0.40
codegen_flags: <defaults>
</compile_context>

<pallas_src>
import functools

import jax
import jax.numpy as jnp
from jax.experimental import pallas as pl
from jax.experimental.pallas import tpu as pltpu


LANE = 128


def _round_up(x, m):
    return (x + m - 1) // m * m


def _pick_tile(n_pad, target, lane=LANE):
    """Largest multiple of `lane` that is <= target and divides n_pad."""
    t = max(min(target, n_pad), lane)
    t = (t // lane) * lane
    while t > lane and n_pad % t != 0:
        t -= lane
    return max(t, lane)


def _vmem_bytes(tm, tk, d_pad):
    """Estimated VMEM working set (BlockSpec double-buffers every operand)."""
    bf16 = 2
    b = 0
    b += 2 * tm * d_pad * bf16          # anchor feature block
    b += 2 * d_pad * tk * bf16          # transposed candidate block
    b += 2 * (tm * 4 + 2 * tk * 4)      # labels + validity (int32)
    b += 2 * tm * 4                     # output block (f32)
    b += 2 * tm * 4                     # min/max scratch
    return b


def _triplet_kernel(xr_ref, xcT_ref, tcol_ref, trow_ref, cvalid_ref, o_ref,
                    minpos_ref, maxneg_ref, *, margin):
    # xr_ref:    (TM, D)  pre-normalized anchor rows (bf16)
    # xcT_ref:   (D, TK)  pre-normalized, pre-transposed candidates (bf16)
    # tcol_ref:  (TM, 1)  anchor labels (int32)
    # trow_ref:  (1, TK)  candidate labels (int32)
    # cvalid_ref:(1, TK)  1 for real candidate columns, 0 for padding
    # o_ref:     (TM, 1)  per-anchor loss (written on last candidate block)
    # scratch: minpos/maxneg (TM, 1) running hard-mining stats (f32)
    k = pl.program_id(1)

    @pl.when(k == 0)
    def _():
        minpos_ref[...] = jnp.ones_like(minpos_ref)        # sentinel sim = +1
        maxneg_ref[...] = jnp.full_like(maxneg_ref, -1.0)   # sentinel sim = -1

    # Cosine-similarity block on the MXU: bf16 operands, f32 accumulate,
    # plain (m,k)x(k,n) layout (rhs was transposed once in the wrapper).
    sim = jnp.dot(xr_ref[...], xcT_ref[...], preferred_element_type=jnp.float32)

    same = tcol_ref[...] == trow_ref[...]      # (TM, TK) bool
    valid = cvalid_ref[...] != 0               # (1, TK)  bool, broadcasts
    sel_pos = jnp.logical_and(same, valid)
    sel_neg = jnp.logical_xor(valid, sel_pos)  # == (~same) & valid

    # Hard mining via running min/max of the similarity (sign flip deferred):
    #   dist_ap = max over same-class of (-sim) = -(min over same-class of sim)
    #   dist_an = min over diff-class of (-sim) = -(max over diff-class of sim)
    pos_cand = jnp.where(sel_pos, sim, 1.0)
    neg_cand = jnp.where(sel_neg, sim, -1.0)

    minpos_ref[...] = jnp.minimum(minpos_ref[...],
                                  jnp.min(pos_cand, axis=-1, keepdims=True))
    maxneg_ref[...] = jnp.maximum(maxneg_ref[...],
                                  jnp.max(neg_cand, axis=-1, keepdims=True))

    @pl.when(k == pl.num_programs(1) - 1)
    def _():
        dist_ap = -minpos_ref[...]             # hardest positive distance
        dist_an = -maxneg_ref[...]             # hardest negative distance
        # MarginRankingLoss(margin), y=1: max(0, -(dist_an - dist_ap) + margin)
        o_ref[...] = jnp.maximum(dist_ap - dist_an + margin, 0.0)


def triplet_loss(features, targets, margin=0.3, *, block_rows=256, block_cols=512):
    """features: (n, d) float, targets: (n,) int. Returns scalar float32 loss."""
    n, d = features.shape

    # One-shot L2 normalization in f32 (F.normalize, eps=1e-12).
    x = features.astype(jnp.float32)
    norm = jnp.sqrt(jnp.sum(x * x, axis=-1, keepdims=True))
    xn = x / jnp.maximum(norm, 1e-12)

    # Pad so the candidate/lane axis and feat dim are lane-dense; skip the
    # pad round trip entirely when already aligned.
    d_pad = _round_up(d, LANE)
    n_pad = _round_up(n, LANE)
    if n_pad > block_cols:
        n_pad = _round_up(n, block_cols)
    if (n_pad, d_pad) != (n, d):
        xn = jnp.pad(xn, ((0, n_pad - n), (0, d_pad - d)))
    t = jnp.pad(targets.astype(jnp.int32), (0, n_pad - n), constant_values=-1)

    xrows = xn.astype(jnp.bfloat16)            # (n_pad, d_pad) anchors
    xcolsT = xrows.T                           # (d_pad, n_pad) candidates (pre-transposed)
    tcol = t.reshape(n_pad, 1)
    trow = t.reshape(1, n_pad)
    col_valid = (jnp.arange(n_pad, dtype=jnp.int32) < n).astype(jnp.int32).reshape(1, n_pad)

    # Tile selection: candidate tile, then anchor tile (keep grid[0] >= 2 when
    # possible so the parallel axis can shard across v7x's two TensorCores).
    tk = _pick_tile(n_pad, block_cols)
    cap_rows = block_rows
    if n_pad >= 2 * LANE:
        cap_rows = min(cap_rows, n_pad // 2)
    tm = _pick_tile(n_pad, cap_rows)

    # Shrink to a v7x-safe VMEM working set (~48 MiB) and derive the limit
    # from actual buffer math instead of a fixed constant.
    budget = 48 * 1024 * 1024
    while _vmem_bytes(tm, tk, d_pad) > budget and tk > LANE:
        tk = _pick_tile(n_pad, tk // 2)
    while _vmem_bytes(tm, tk, d_pad) > budget and tm > LANE:
        tm = _pick_tile(n_pad, tm // 2)
    vmem_limit = int(min(max(_vmem_bytes(tm, tk, d_pad) * 3 // 2,
                             16 * 1024 * 1024), budget))

    grid = (n_pad // tm, n_pad // tk)

    # TODO(synk): for extremely small batches the 128-lane padding leaves most
    # of the MXU/vregs idle; acceptable since total work is tiny there.
    losses = pl.pallas_call(
        functools.partial(_triplet_kernel, margin=float(margin)),
        out_shape=jax.ShapeDtypeStruct((n_pad, 1), jnp.float32),
        grid_spec=pltpu.PrefetchScalarGridSpec(
            num_scalar_prefetch=0,
            grid=grid,
            in_specs=[
                pl.BlockSpec((tm, d_pad), lambda i, k: (i, 0)),   # anchor rows (bf16)
                pl.BlockSpec((d_pad, tk), lambda i, k: (0, k)),   # candidates^T (bf16)
                pl.BlockSpec((tm, 1), lambda i, k: (i, 0)),       # anchor labels
                pl.BlockSpec((1, tk), lambda i, k: (0, k)),       # candidate labels
                pl.BlockSpec((1, tk), lambda i, k: (0, k)),       # candidate validity
            ],
            out_specs=pl.BlockSpec((tm, 1), lambda i, k: (i, 0)),
            scratch_shapes=[
                pltpu.VMEM((tm, 1), jnp.float32),   # running min of positive sims
                pltpu.VMEM((tm, 1), jnp.float32),   # running max of negative sims
            ],
        ),
        compiler_params=pltpu.CompilerParams(
            dimension_semantics=("parallel", "arbitrary"),
            vmem_limit_bytes=vmem_limit,
        ),
    )(xrows, xcolsT, tcol, trow, col_valid)

    return jnp.mean(losses[:n, 0])


def _triplet_loss_ref(features, targets, margin=0.3):
    # Pure-JAX reference mirroring the PyTorch module (f32 throughout).
    x = features.astype(jnp.float32)
    xn = x / jnp.maximum(jnp.linalg.norm(x, axis=-1, keepdims=True), 1e-12)
    dist = -(xn @ xn.T)
    mask = (targets[:, None] == targets[None, :]).astype(jnp.float32)
    dist_ap = jnp.max(dist * mask - (1.0 - mask), axis=-1, keepdims=True)
    dist_an = jnp.min(dist * (1.0 - mask) + mask, axis=-1, keepdims=True)
    return jnp.mean(jnp.maximum(dist_ap - dist_an + margin, 0.0))


if __name__ == "__main__":
    key = jax.random.PRNGKey(0)
    batch, feat_dim = 8, 32
    kx, _ = jax.random.split(key)
    features = jax.random.normal(kx, (batch, feat_dim), dtype=jnp.float32)
    # 4 identities, 2 samples each -> every anchor has a positive and a negative
    targets = jnp.array([0, 0, 1, 1, 2, 2, 3, 3], dtype=jnp.int32)

    loss = triplet_loss(features, targets, margin=0.3)
    jax.block_until_ready(loss)

    ref = _triplet_loss_ref(features, targets, margin=0.3)
    # bf16 MXU operands => ~1e-3-scale error in cosine sims; tolerance loosened.
    assert jnp.allclose(loss, ref, atol=2e-2, rtol=0.0), (loss, ref)
    print("KERNEL_OK")
</pallas_src>

<mosaic_0001>
module attributes {stable_mosaic.version = 11 : i64} {
  func.func @_triplet_kernel(%arg0: i32, %arg1: i32, %arg2: memref<128x128xbf16, #tpu.memory_space<vmem>>, %arg3: memref<128x128xbf16, #tpu.memory_space<vmem>>, %arg4: memref<128x1xi32, #tpu.memory_space<vmem>>, %arg5: memref<1x128xi32, #tpu.memory_space<vmem>>, %arg6: memref<1x128xi32, #tpu.memory_space<vmem>>, %arg7: memref<128x1xf32, #tpu.memory_space<vmem>>, %arg8: memref<128x1xf32, #tpu.memory_space<vmem>>, %arg9: memref<128x1xf32, #tpu.memory_space<vmem>>) attributes {dimension_semantics = [#tpu.dimension_semantics<parallel>, #tpu.dimension_semantics<arbitrary>], iteration_bounds = array<i64: 1, 1>, scalar_prefetch = 0 : i64, scratch_operands = 2 : i64, tpu.core_type = #tpu.core_type<tc>, window_params = [{transform_indices = @transform_0, window_bounds = array<i64: 128, 128>}, {transform_indices = @transform_1, window_bounds = array<i64: 128, 128>}, {transform_indices = @transform_2, window_bounds = array<i64: 128, 1>}, {transform_indices = @transform_3, window_bounds = array<i64: 1, 128>}, {transform_indices = @transform_4, window_bounds = array<i64: 1, 128>}, {transform_indices = @transform_5, window_bounds = array<i64: 128, 1>}]} {
    %c0_i32 = arith.constant 0 : i32
    %0 = arith.cmpi eq, %arg1, %c0_i32 : i32
    %1 = arith.extui %0 : i1 to i32
    %c0_i32_0 = arith.constant 0 : i32
    %2 = arith.cmpi ne, %1, %c0_i32_0 : i32
    scf.if %2 {
      %cst_25 = arith.constant 1.000000e+00 : f32
      %35 = vector.broadcast %cst_25 : f32 to vector<128x1xf32>
      %c0_26 = arith.constant 0 : index
      %c0_27 = arith.constant 0 : index
      %36 = vector.load %arg8[%c0_26, %c0_27] : memref<128x1xf32, #tpu.memory_space<vmem>>, vector<128x1xf32>
      tpu.vector_store %arg8[%c0_26, %c0_27], %35 {strides = array<i32>} : memref<128x1xf32, #tpu.memory_space<vmem>>, vector<128x1xf32>,
      %cst_28 = arith.constant -1.000000e+00 : f32
      %37 = vector.broadcast %cst_28 : f32 to vector<128x1xf32>
      %c0_29 = arith.constant 0 : index
      %c0_30 = arith.constant 0 : index
      %38 = vector.load %arg9[%c0_29, %c0_30] : memref<128x1xf32, #tpu.memory_space<vmem>>, vector<128x1xf32>
      tpu.vector_store %arg9[%c0_29, %c0_30], %37 {strides = array<i32>} : memref<128x1xf32, #tpu.memory_space<vmem>>, vector<128x1xf32>,
    } else {
    }
    %c0 = arith.constant 0 : index
    %c0_1 = arith.constant 0 : index
    %3 = vector.load %arg2[%c0, %c0_1] : memref<128x128xbf16, #tpu.memory_space<vmem>>, vector<128x128xbf16>
    %c0_2 = arith.constant 0 : index
    %c0_3 = arith.constant 0 : index
    %4 = vector.load %arg3[%c0_2, %c0_3] : memref<128x128xbf16, #tpu.memory_space<vmem>>, vector<128x128xbf16>
    %cst = arith.constant dense<0.000000e+00> : vector<128x128xf32>
    %5 = tpu.matmul %3, %4, %cst {dimension_numbers = #tpu.dot_dimension_numbers<[1], [0], [0], [1], [0, 0, 1, 1], [], []>} : vector<128x128xbf16>, vector<128x128xbf16>, vector<128x128xf32> -> vector<128x128xf32>
    %c0_4 = arith.constant 0 : index
    %c0_5 = arith.constant 0 : index
    %6 = vector.load %arg4[%c0_4, %c0_5] : memref<128x1xi32, #tpu.memory_space<vmem>>, vector<128x1xi32>
    %c0_6 = arith.constant 0 : index
    %c0_7 = arith.constant 0 : index
    %7 = vector.load %arg5[%c0_6, %c0_7] : memref<1x128xi32, #tpu.memory_space<vmem>>, vector<1x128xi32>
    %8 = vector.broadcast %6 : vector<128x1xi32> to vector<128x128xi32>
    %9 = vector.broadcast %7 : vector<1x128xi32> to vector<128x128xi32>
    %10 = arith.cmpi eq, %8, %9 : vector<128x128xi32>
    %c0_8 = arith.constant 0 : index
    %c0_9 = arith.constant 0 : index
    %11 = vector.load %arg6[%c0_8, %c0_9] : memref<1x128xi32, #tpu.memory_space<vmem>>, vector<1x128xi32>
    %c0_i32_10 = arith.constant 0 : i32
    %12 = vector.broadcast %c0_i32_10 : i32 to vector<1x128xi32>
    %13 = arith.cmpi ne, %11, %12 : vector<1x128xi32>
    %14 = vector.broadcast %13 : vector<1x128xi1> to vector<128x128xi1>
    %15 = arith.andi %10, %14 : vector<128x128xi1>
    %16 = vector.broadcast %13 : vector<1x128xi1> to vector<128x128xi1>
    %17 = arith.xori %16, %15 : vector<128x128xi1>
    %cst_11 = arith.constant 1.000000e+00 : f32
    %18 = vector.broadcast %cst_11 : f32 to vector<128x128xf32>
    %19 = arith.select %15, %5, %18 : vector<128x128xi1>, vector<128x128xf32>
    %cst_12 = arith.constant -1.000000e+00 : f32
    %20 = vector.broadcast %cst_12 : f32 to vector<128x128xf32>
    %21 = arith.select %17, %5, %20 : vector<128x128xi1>, vector<128x128xf32>
    %c0_13 = arith.constant 0 : index
    %c0_14 = arith.constant 0 : index
    %22 = vector.load %arg8[%c0_13, %c0_14] : memref<128x1xf32, #tpu.memory_space<vmem>>, vector<128x1xf32>
    %cst_15 = arith.constant dense<0x7F800000> : vector<128xf32>
    %23 = vector.multi_reduction <minimumf>, %19, %cst_15 [1] : vector<128x128xf32> to vector<128xf32>
    %24 = vector.shape_cast %23 : vector<128xf32> to vector<128x1xf32>
    %25 = arith.minimumf %22, %24 : vector<128x1xf32>
    %c0_16 = arith.constant 0 : index
    %c0_17 = arith.constant 0 : index
    %26 = vector.load %arg8[%c0_16, %c0_17] : memref<128x1xf32, #tpu.memory_space<vmem>>, vector<128x1xf32>
    tpu.vector_store %arg8[%c0_16, %c0_17], %25 {strides = array<i32>} : memref<128x1xf32, #tpu.memory_space<vmem>>, vector<128x1xf32>,
    %c0_18 = arith.constant 0 : index
    %c0_19 = arith.constant 0 : index
    %27 = vector.load %arg9[%c0_18, %c0_19] : memref<128x1xf32, #tpu.memory_space<vmem>>, vector<128x1xf32>
    %cst_20 = arith.constant dense<0xFF800000> : vector<128xf32>
    %28 = vector.multi_reduction <maximumf>, %21, %cst_20 [1] : vector<128x128xf32> to vector<128xf32>
    %29 = vector.shape_cast %28 : vector<128xf32> to vector<128x1xf32>
    %30 = arith.maximumf %27, %29 : vector<128x1xf32>
    %c0_21 = arith.constant 0 : index
    %c0_22 = arith.constant 0 : index
    %31 = vector.load %arg9[%c0_21, %c0_22] : memref<128x1xf32, #tpu.memory_space<vmem>>, vector<128x1xf32>
    tpu.vector_store %arg9[%c0_21, %c0_22], %30 {strides = array<i32>} : memref<128x1xf32, #tpu.memory_space<vmem>>, vector<128x1xf32>,
    %c0_i32_23 = arith.constant 0 : i32
    %32 = arith.cmpi eq, %arg1, %c0_i32_23 : i32
    %33 = arith.extui %32 : i1 to i32
    %c0_i32_24 = arith.constant 0 : i32
    %34 = arith.cmpi ne, %33, %c0_i32_24 : i32
    scf.if %34 {
      %c0_25 = arith.constant 0 : index
      %c0_26 = arith.constant 0 : index
      %35 = vector.load %arg8[%c0_25, %c0_26] : memref<128x1xf32, #tpu.memory_space<vmem>>, vector<128x1xf32>
      %cst_27 = arith.constant 0.000000e+00 : f32
      %36 = vector.broadcast %cst_27 : f32 to vector<128x1xf32>
      %37 = arith.subf %36, %35 : vector<128x1xf32>
      %c0_28 = arith.constant 0 : index
      %c0_29 = arith.constant 0 : index
      %38 = vector.load %arg9[%c0_28, %c0_29] : memref<128x1xf32, #tpu.memory_space<vmem>>, vector<128x1xf32>
      %cst_30 = arith.constant 0.000000e+00 : f32
      %39 = vector.broadcast %cst_30 : f32 to vector<128x1xf32>
      %40 = arith.subf %39, %38 : vector<128x1xf32>
      %41 = arith.subf %37, %40 : vector<128x1xf32>
      %cst_31 = arith.constant 3.000000e-01 : f32
      %42 = vector.broadcast %cst_31 : f32 to vector<128x1xf32>
      %43 = arith.addf %41, %42 : vector<128x1xf32>
      %cst_32 = arith.constant 0.000000e+00 : f32
      %44 = vector.broadcast %cst_32 : f32 to vector<128x1xf32>
      %45 = arith.maximumf %43, %44 : vector<128x1xf32>
      %c0_33 = arith.constant 0 : index
      %c0_34 = arith.constant 0 : index
      %46 = vector.load %arg7[%c0_33, %c0_34] : memref<128x1xf32, #tpu.memory_space<vmem>>, vector<128x1xf32>
      tpu.vector_store %arg7[%c0_33, %c0_34], %45 {strides = array<i32>} : memref<128x1xf32, #tpu.memory_space<vmem>>, vector<128x1xf32>,
    } else {
    }
    return
  }
  func.func @transform_0(%arg0: i32, %arg1: i32) -> (i32, i32) {
    %c0_i32 = arith.constant 0 : i32
    %c0_i32_0 = arith.constant 0 : i32
    return %arg0, %c0_i32 : i32, i32
  }
  func.func @transform_1(%arg0: i32, %arg1: i32) -> (i32, i32) {
    %c0_i32 = arith.constant 0 : i32
    %c0_i32_0 = arith.constant 0 : i32
    return %c0_i32, %arg1 : i32, i32
  }
  func.func @transform_2(%arg0: i32, %arg1: i32) -> (i32, i32) {
    %c0_i32 = arith.constant 0 : i32
    %c0_i32_0 = arith.constant 0 : i32
    return %arg0, %c0_i32 : i32, i32
  }
  func.func @transform_3(%arg0: i32, %arg1: i32) -> (i32, i32) {
    %c0_i32 = arith.constant 0 : i32
    %c0_i32_0 = arith.constant 0 : i32
    return %c0_i32, %arg1 : i32, i32
  }
  func.func @transform_4(%arg0: i32, %arg1: i32) -> (i32, i32) {
    %c0_i32 = arith.constant 0 : i32
    %c0_i32_0 = arith.constant 0 : i32
    return %c0_i32, %arg1 : i32, i32
  }
  func.func @transform_5(%arg0: i32, %arg1: i32) -> (i32, i32) {
    %c0_i32 = arith.constant 0 : i32
    %c0_i32_0 = arith.constant 0 : i32
    return %arg0, %c0_i32 : i32, i32
  }
}

</mosaic_0001>

<llo_original>
// kernel: tpu_custom_call.1
$region0: #{tpu_custom_call.1}
  #allocation0 [shape = 'u32[]', space=smem, size = 0x4, offset = 0x4, fixed_abs, tag = 'smem constant byte address 0x4 - core index']
  #allocation1 [shape = 'u32[144,128]{1,0:T(1,128)}', space=vmem, size = 0x12000, scoped, tag = 'internal scratch']
  #allocation2 [shape = 'f32[128,1]{1,0:T(8,128)}', space=vmem, size = 0x10000, scoped, tag = 'scratch operand']
  #allocation3 [shape = 'f32[128,1]{1,0:T(8,128)}', space=vmem, size = 0x10000, scoped, tag = 'scratch operand']
  %s0 = inlined_call_operand.vmem [shape: bf16[128,128], index: 0, kind: input, shape index: {}]
  %s1 = inlined_call_operand.vmem [shape: bf16[128,128], index: 1, kind: input, shape index: {}]
  %s2 = inlined_call_operand.vmem [shape: s32[128,1], index: 2, kind: input, shape index: {}]
  %s3 = inlined_call_operand.vmem [shape: s32[1,128], index: 3, kind: input, shape index: {}]
  %s4 = inlined_call_operand.vmem [shape: s32[1,128], index: 4, kind: input, shape index: {}]
  %s5 = inlined_call_operand.vmem [shape: f32[128,1], index: 5, kind: output, shape index: {}]
  %s6 = sld [smem:[#allocation0]]
  $region38: #{tpu_custom_call.1} parent=0
    _
  %s8 = ssub.s32 1, %s6
  %s9 = scalar_select 0, %s8, %s6
  // Predicated region
  $region2: #{tpu_custom_call.1} parent=0 // pred_check
    _
  $region3: #{tpu_custom_call.1} parent=0 // pred_check_branch
    %11 = sbr.rel (0) target = $region5
  $region4: #{tpu_custom_call.1} parent=0 // pred_region
    _
  $region5: #{tpu_custom_call.1} parent=0 // pred_fallthru
    _
  // Predicated region
  $region6: #{tpu_custom_call.1} parent=0 // pred_check
    _
  $region7: #{tpu_custom_call.1} parent=0 // pred_check_branch
    %13 = sbr.rel (0) target = $region9
  $region8: #{tpu_custom_call.1} parent=0 // pred_region
    _
  $region9: #{tpu_custom_call.1} parent=0 // pred_fallthru
    _
  // Predicated region
  $region10: #{tpu_custom_call.1} parent=0 // pred_check
    _
  $region11: #{tpu_custom_call.1} parent=0 // pred_check_branch
    %15 = sbr.rel (0) target = $region13
  $region12: #{tpu_custom_call.1} parent=0 // pred_region
    _
  $region13: #{tpu_custom_call.1} parent=0 // pred_fallthru
    _
  // Predicated region
  $region14: #{tpu_custom_call.1} parent=0 // pred_check
    _
  $region15: #{tpu_custom_call.1} parent=0 // pred_check_branch
    %17 = sbr.rel (0) target = $region17
  $region16: #{tpu_custom_call.1} parent=0 // pred_region
    _
  $region17: #{tpu_custom_call.1} parent=0 // pred_fallthru
    _
  // Predicated region
  $region18: #{tpu_custom_call.1} parent=0 // pred_check
    _
  $region19: #{tpu_custom_call.1} parent=0 // pred_check_branch
    %19 = sbr.rel (0) target = $region21
  $region20: #{tpu_custom_call.1} parent=0 // pred_region
    _
  $region21: #{tpu_custom_call.1} parent=0 // pred_fallthru
    _
  %p21 = scmp.eq.s32.totalorder 0, 0
  // Predicated region
  $region22: #{tpu_custom_call.1} parent=0 // pred_check
    %p22 = pneg %p21
  $region23: #{tpu_custom_call.1} parent=0 // pred_check_branch
    %24 = sbr.rel (%p22) target = $region25
  $region24: #{tpu_custom_call.1} parent=0 // pred_region
    %vm25 = vcmask 7168
    %26 = vst.msk [vmem:[#allocation2] sm:$0xff] %vm25, 1.0
    %27 = vst.msk [vmem:[#allocation2 + $0x8] sm:$0xff] %vm25, 1.0
    %28 = vst.msk [vmem:[#allocation2 + $0x10] sm:$0xff] %vm25, 1.0
    %29 = vst.msk [vmem:[#allocation2 + $0x18] sm:$0xff] %vm25, 1.0
    %30 = vst.msk [vmem:[#allocation2 + $0x20] sm:$0xff] %vm25, 1.0
    %31 = vst.msk [vmem:[#allocation2 + $0x28] sm:$0xff] %vm25, 1.0
    %32 = vst.msk [vmem:[#allocation2 + $0x30] sm:$0xff] %vm25, 1.0
    %33 = vst.msk [vmem:[#allocation2 + $0x38] sm:$0xff] %vm25, 1.0
    %34 = vst.msk [vmem:[#allocation2 + $0x40] sm:$0xff] %vm25, 1.0
    %35 = vst.msk [vmem:[#allocation2 + $0x48] sm:$0xff] %vm25, 1.0
    %36 = vst.msk [vmem:[#allocation2 + $0x50] sm:$0xff] %vm25, 1.0
    %37 = vst.msk [vmem:[#allocation2 + $0x58] sm:$0xff] %vm25, 1.0
    %38 = vst.msk [vmem:[#allocation2 + $0x60] sm:$0xff] %vm25, 1.0
    %39 = vst.msk [vmem:[#allocation2 + $0x68] sm:$0xff] %vm25, 1.0
    %40 = vst.msk [vmem:[#allocation2 + $0x70] sm:$0xff] %vm25, 1.0
    %41 = vst.msk [vmem:[#allocation2 + $0x78] sm:$0xff] %vm25, 1.0
    %42 = vst.msk [vmem:[#allocation3] sm:$0xff] %vm25, -1.0
    %43 = vst.msk [vmem:[#allocation3 + $0x8] sm:$0xff] %vm25, -1.0
    %44 = vst.msk [vmem:[#allocation3 + $0x10] sm:$0xff] %vm25, -1.0
    %45 = vst.msk [vmem:[#allocation3 + $0x18] sm:$0xff] %vm25, -1.0
    %46 = vst.msk [vmem:[#allocation3 + $0x20] sm:$0xff] %vm25, -1.0
    %47 = vst.msk [vmem:[#allocation3 + $0x28] sm:$0xff] %vm25, -1.0
    %48 = vst.msk [vmem:[#allocation3 + $0x30] sm:$0xff] %vm25, -1.0
    %49 = vst.msk [vmem:[#allocation3 + $0x38] sm:$0xff] %vm25, -1.0
    %50 = vst.msk [vmem:[#allocation3 + $0x40] sm:$0xff] %vm25, -1.0
    %51 = vst.msk [vmem:[#allocation3 + $0x48] sm:$0xff] %vm25, -1.0
    %52 = vst.msk [vmem:[#allocation3 + $0x50] sm:$0xff] %vm25, -1.0
    %53 = vst.msk [vmem:[#allocation3 + $0x58] sm:$0xff] %vm25, -1.0
    %54 = vst.msk [vmem:[#allocation3 + $0x60] sm:$0xff] %vm25, -1.0
    %55 = vst.msk [vmem:[#allocation3 + $0x68] sm:$0xff] %vm25, -1.0
    %56 = vst.msk [vmem:[#allocation3 + $0x70] sm:$0xff] %vm25, -1.0
    %57 = vst.msk [vmem:[#allocation3 + $0x78] sm:$0xff] %vm25, -1.0
  $region25: #{tpu_custom_call.1} parent=0 // pred_fallthru
    _
  %v58 = vld [vmem:[%s0] sm:$0xf]
  %v59 = vld [vmem:[%s0 + $0x4] sm:$0xf]
  %v60 = vld [vmem:[%s0 + $0x8] sm:$0xf]
  %v61 = vld [vmem:[%s0 + $0xc] sm:$0xf]
  %v62 = vld [vmem:[%s0 + $0x10] sm:$0xf]
  %v63 = vld [vmem:[%s0 + $0x14] sm:$0xf]
  %v64 = vld [vmem:[%s0 + $0x18] sm:$0xf]
  %v65 = vld [vmem:[%s0 + $0x1c] sm:$0xf]
  %v66 = vld [vmem:[%s0 + $0x20] sm:$0xf]
  %v67 = vld [vmem:[%s0 + $0x24] sm:$0xf]
  %v68 = vld [vmem:[%s0 + $0x28] sm:$0xf]
  %v69 = vld [vmem:[%s0 + $0x2c] sm:$0xf]
  %v70 = vld [vmem:[%s0 + $0x30] sm:$0xf]
  %v71 = vld [vmem:[%s0 + $0x34] sm:$0xf]
  %v72 = vld [vmem:[%s0 + $0x38] sm:$0xf]
  %v73 = vld [vmem:[%s0 + $0x3c] sm:$0xf]
  %v74 = vld [vmem:[%s1] sm:$0xf]
  %v75 = vld [vmem:[%s1 + $0x4] sm:$0xf]
  %v76 = vld [vmem:[%s1 + $0x8] sm:$0xf]
  %v77 = vld [vmem:[%s1 + $0xc] sm:$0xf]
  %v78 = vld [vmem:[%s1 + $0x10] sm:$0xf]
  %v79 = vld [vmem:[%s1 + $0x14] sm:$0xf]
  %v80 = vld [vmem:[%s1 + $0x18] sm:$0xf]
  %v81 = vld [vmem:[%s1 + $0x1c] sm:$0xf]
  %v82 = vld [vmem:[%s1 + $0x20] sm:$0xf]
  %v83 = vld [vmem:[%s1 + $0x24] sm:$0xf]
  %v84 = vld [vmem:[%s1 + $0x28] sm:$0xf]
  %v85 = vld [vmem:[%s1 + $0x2c] sm:$0xf]
  %v86 = vld [vmem:[%s1 + $0x30] sm:$0xf]
  %v87 = vld [vmem:[%s1 + $0x34] sm:$0xf]
  %v88 = vld [vmem:[%s1 + $0x38] sm:$0xf]
  %v89 = vld [vmem:[%s1 + $0x3c] sm:$0xf]
  %v106 = vunpack.c.l.b16 %v58
  %v107 = vunpack.c.l.b16 %v59
  %v108 = vunpack.c.l.b16 %v60
  %v109 = vunpack.c.l.b16 %v61
  %v110 = vunpack.c.l.b16 %v62
  %v111 = vunpack.c.l.b16 %v63
  %v112 = vunpack.c.l.b16 %v64
  %v113 = vunpack.c.l.b16 %v65
  %v114 = vunpack.c.l.b16 %v66
  %v115 = vunpack.c.l.b16 %v67
  %v116 = vunpack.c.l.b16 %v68
  %v117 = vunpack.c.l.b16 %v69
  %v118 = vunpack.c.l.b16 %v70
  %v119 = vunpack.c.l.b16 %v71
  %v120 = vunpack.c.l.b16 %v72
  %v121 = vunpack.c.l.b16 %v73
  %v122 = vpack.c.b16 %v107, %v106
  %v123 = vpack.c.b16 %v109, %v108
  %v124 = vpack.c.b16 %v111, %v110
  %v125 = vpack.c.b16 %v113, %v112
  %v126 = vpack.c.b16 %v115, %v114
  %v127 = vpack.c.b16 %v117, %v116
  %v128 = vpack.c.b16 %v119, %v118
  %v129 = vpack.c.b16 %v121, %v120
  %v154 = vunpack.c.l.b16 %v74
  %v155 = vunpack.c.l.b16 %v75
  %v156 = vunpack.c.l.b16 %v76
  %v157 = vunpack.c.l.b16 %v77
  %v158 = vunpack.c.l.b16 %v78
  %v159 = vunpack.c.l.b16 %v79
  %v160 = vunpack.c.l.b16 %v80
  %v161 = vunpack.c.l.b16 %v81
  %v162 = vunpack.c.l.b16 %v82
  %v163 = vunpack.c.l.b16 %v83
  %v164 = vunpack.c.l.b16 %v84
  %v165 = vunpack.c.l.b16 %v85
  %v166 = vunpack.c.l.b16 %v86
  %v167 = vunpack.c.l.b16 %v87
  %v168 = vunpack.c.l.b16 %v88
  %v169 = vunpack.c.l.b16 %v89
  %v170 = vpack.c.b16 %v155, %v154
  %v171 = vpack.c.b16 %v157, %v156
  %v172 = vpack.c.b16 %v159, %v158
  %v173 = vpack.c.b16 %v161, %v160
  %v174 = vpack.c.b16 %v163, %v162
  %v175 = vpack.c.b16 %v165, %v164
  %v176 = vpack.c.b16 %v167, %v166
  %v177 = vpack.c.b16 %v169, %v168
  %186 = vmatprep.subr.bf16.mxu0 0
  %187 = vmatpush1.bf16.msra.mxu0 %v170
  %188 = vmatprep.subr.bf16.mxu0 0
  %189 = vmatpush1.bf16.msra.mxu0 %v171
  %190 = vmatprep.subr.bf16.mxu0 0
  %191 = vmatpush1.bf16.msra.mxu0 %v172
  %192 = vmatprep.subr.bf16.mxu0 0
  %193 = vmatpush1.bf16.msra.mxu0 %v173
  %194 = vmatprep.subr.bf16.mxu0 0
  %195 = vmatpush1.bf16.msra.mxu0 %v174
  %196 = vmatprep.subr.bf16.mxu0 0
  %197 = vmatpush1.bf16.msra.mxu0 %v175
  %198 = vmatprep.subr.bf16.mxu0 0
  %199 = vmatpush1.bf16.msra.mxu0 %v176
  %200 = vmatprep.subr.bf16.mxu0 0
  %201 = vmatpush1.bf16.msra.mxu0 %v177
  %202 = vmatprep.subr.bf16.mxu0 0
  %203 = vmatpush1.bf16.msra.mxu0 0
  %204 = vmatprep.subr.bf16.mxu0 0
  %205 = vmatpush1.bf16.msra.mxu0 0
  %206 = vmatprep.subr.bf16.mxu0 0
  %207 = vmatpush1.bf16.msra.mxu0 0
  %208 = vmatprep.subr.bf16.mxu0 0
  %209 = vmatpush1.bf16.msra.mxu0 0
  %210 = vmatprep.subr.bf16.mxu0 0
  %211 = vmatpush1.bf16.msra.mxu0 0
  %212 = vmatprep.subr.bf16.mxu0 0
  %213 = vmatpush1.bf16.msra.mxu0 0
  %214 = vmatprep.subr.bf16.mxu0 0
  %215 = vmatpush1.bf16.msra.mxu0 0
  %216 = vmatprep.subr.bf16.mxu0 0
  %217 = vmatpush1.bf16.msra.mxu0 0
  %218 = vmatprep.mubr.bf16.mxu0 0
  %219 = vmatmul.mubr.bf16.gmra.mrb[0].mxu0 %v122
  %v220 = vpop.f32.mrb[0].mxu0
  %v221 = vadd.f32 0.0, %v220
  %v222 = vpop.f32.mrb[0].mxu0
  %v223 = vpop.f32.mrb[0].mxu0
  %v224 = vadd.f32 0.0, %v223
  %v225 = vpop.f32.mrb[0].mxu0
  %226 = vmatprep.mubr.bf16.mxu0 0
  %227 = vmatmul.mubr.bf16.gmra.mrb[0].mxu0 %v123
  %v228 = vpop.f32.mrb[0].mxu0
  %v229 = vadd.f32 0.0, %v228
  %v230 = vpop.f32.mrb[0].mxu0
  %v231 = vpop.f32.mrb[0].mxu0
  %v232 = vadd.f32 0.0, %v231
  %v233 = vpop.f32.mrb[0].mxu0
  %234 = vmatprep.mubr.bf16.mxu0 0
  %235 = vmatmul.mubr.bf16.gmra.mrb[0].mxu0 %v124
  %v236 = vpop.f32.mrb[0].mxu0
  %v237 = vadd.f32 0.0, %v236
  %v238 = vpop.f32.mrb[0].mxu0
  %v239 = vpop.f32.mrb[0].mxu0
  %v240 = vadd.f32 0.0, %v239
  %v241 = vpop.f32.mrb[0].mxu0
  %242 = vmatprep.mubr.bf16.mxu0 0
  %243 = vmatmul.mubr.bf16.gmra.mrb[0].mxu0 %v125
  %v244 = vpop.f32.mrb[0].mxu0
  %v245 = vadd.f32 0.0, %v244
  %v246 = vpop.f32.mrb[0].mxu0
  %v247 = vpop.f32.mrb[0].mxu0
  %v248 = vadd.f32 0.0, %v247
  %v249 = vpop.f32.mrb[0].mxu0
  %250 = vmatprep.mubr.bf16.mxu0 0
  %251 = vmatmul.mubr.bf16.gmra.mrb[0].mxu0 %v126
  %v252 = vpop.f32.mrb[0].mxu0
  %v253 = vadd.f32 0.0, %v252
  %v254 = vpop.f32.mrb[0].mxu0
  %v255 = vpop.f32.mrb[0].mxu0
  %v256 = vadd.f32 0.0, %v255
  %v257 = vpop.f32.mrb[0].mxu0
  %258 = vmatprep.mubr.bf16.mxu0 0
  %259 = vmatmul.mubr.bf16.gmra.mrb[0].mxu0 %v127
  %v260 = vpop.f32.mrb[0].mxu0
  %v261 = vadd.f32 0.0, %v260
  %v262 = vpop.f32.mrb[0].mxu0
  %v263 = vpop.f32.mrb[0].mxu0
  %v264 = vadd.f32 0.0, %v263
  %v265 = vpop.f32.mrb[0].mxu0
  %266 = vmatprep.mubr.bf16.mxu0 0
  %267 = vmatmul.mubr.bf16.gmra.mrb[0].mxu0 %v128
  %v268 = vpop.f32.mrb[0].mxu0
  %v269 = vadd.f32 0.0, %v268
  %v270 = vpop.f32.mrb[0].mxu0
  %v271 = vpop.f32.mrb[0].mxu0
  %v272 = vadd.f32 0.0, %v271
  %v273 = vpop.f32.mrb[0].mxu0
  %274 = vmatprep.mubr.bf16.mxu0 0
  %275 = vmatmul.mubr.bf16.gmra.mrb[0].mxu0 %v129
  %v276 = vpop.f32.mrb[0].mxu0
  %v277 = vadd.f32 0.0, %v276
  %v278 = vpop.f32.mrb[0].mxu0
  %v279 = vpop.f32.mrb[0].mxu0
  %v280 = vadd.f32 0.0, %v279
  %v281 = vpop.f32.mrb[0].mxu0
  %282 = vdwg.mxu0
  %v283 = vld [vmem:[%s2] sm:$0xff]
  %v284 = vld [vmem:[%s2 + $0x8] sm:$0xff]
  %v285 = vld [vmem:[%s2 + $0x10] sm:$0xff]
  %v286 = vld [vmem:[%s2 + $0x18] sm:$0xff]
  %v287 = vld [vmem:[%s2 + $0x20] sm:$0xff]
  %v288 = vld [vmem:[%s2 + $0x28] sm:$0xff]
  %v289 = vld [vmem:[%s2 + $0x30] sm:$0xff]
  %v290 = vld [vmem:[%s2 + $0x38] sm:$0xff]
  %v291 = vld [vmem:[%s2 + $0x40] sm:$0xff]
  %v292 = vld [vmem:[%s2 + $0x48] sm:$0xff]
  %v293 = vld [vmem:[%s2 + $0x50] sm:$0xff]
  %v294 = vld [vmem:[%s2 + $0x58] sm:$0xff]
  %v295 = vld [vmem:[%s2 + $0x60] sm:$0xff]
  %v296 = vld [vmem:[%s2 + $0x68] sm:$0xff]
  %v297 = vld [vmem:[%s2 + $0x70] sm:$0xff]
  %v298 = vld [vmem:[%s2 + $0x78] sm:$0xff]
  %v299 = vld [vmem:[%s3] sm:$0x1]
  %300 = vset.pattern.permute.xlu0 0
  %301 = vperm.xlu0 %300, %v283
  %v302 = vpop.permute.xlu0 %301
  %303 = vset.pattern.permute.xlu0 0
  %304 = vperm.xlu0 %303, %v284
  %v305 = vpop.permute.xlu0 %304
  %306 = vset.pattern.permute.xlu0 0
  %307 = vperm.xlu0 %306, %v285
  %v308 = vpop.permute.xlu0 %307
  %309 = vset.pattern.permute.xlu0 0
  %310 = vperm.xlu0 %309, %v286
  %v311 = vpop.permute.xlu0 %310
  %312 = vset.pattern.permute.xlu0 0
  %313 = vperm.xlu0 %312, %v287
  %v314 = vpop.permute.xlu0 %313
  %315 = vset.pattern.permute.xlu0 0
  %316 = vperm.xlu0 %315, %v288
  %v317 = vpop.permute.xlu0 %316
  %318 = vset.pattern.permute.xlu0 0
  %319 = vperm.xlu0 %318, %v289
  %v320 = vpop.permute.xlu0 %319
  %321 = vset.pattern.permute.xlu0 0
  %322 = vperm.xlu0 %321, %v290
  %v323 = vpop.permute.xlu0 %322
  %324 = vset.pattern.permute.xlu0 0
  %325 = vperm.xlu0 %324, %v291
  %v326 = vpop.permute.xlu0 %325
  %327 = vset.pattern.permute.xlu0 0
  %328 = vperm.xlu0 %327, %v292
  %v329 = vpop.permute.xlu0 %328
  %330 = vset.pattern.permute.xlu0 0
  %331 = vperm.xlu0 %330, %v293
  %v332 = vpop.permute.xlu0 %331
  %333 = vset.pattern.permute.xlu0 0
  %334 = vperm.xlu0 %333, %v294
  %v335 = vpop.permute.xlu0 %334
  %336 = vset.pattern.permute.xlu0 0
  %337 = vperm.xlu0 %336, %v295
  %v338 = vpop.permute.xlu0 %337
  %339 = vset.pattern.permute.xlu0 0
  %340 = vperm.xlu0 %339, %v296
  %v341 = vpop.permute.xlu0 %340
  %342 = vset.pattern.permute.xlu0 0
  %343 = vperm.xlu0 %342, %v297
  %v344 = vpop.permute.xlu0 %343
  %345 = vset.pattern.permute.xlu0 0
  %346 = vperm.xlu0 %345, %v298
  %v347 = vpop.permute.xlu0 %346
  %v348 = vlaneseq
  %v349 = vshrl.u32 %v348, 7
  %v350 = vsub.s32 0, %v349
  %v351 = vrot.slane %v299, %v350
  %vm352 = vcmp.eq.s32.totalorder %v302, %v351
  %vm353 = vcmp.eq.s32.totalorder %v305, %v351
  %vm354 = vcmp.eq.s32.totalorder %v308, %v351
  %vm355 = vcmp.eq.s32.totalorder %v311, %v351
  %vm356 = vcmp.eq.s32.totalorder %v314, %v351
  %vm357 = vcmp.eq.s32.totalorder %v317, %v351
  %vm358 = vcmp.eq.s32.totalorder %v320, %v351
  %vm359 = vcmp.eq.s32.totalorder %v323, %v351
  %vm360 = vcmp.eq.s32.totalorder %v326, %v351
  %vm361 = vcmp.eq.s32.totalorder %v329, %v351
  %vm362 = vcmp.eq.s32.totalorder %v332, %v351
  %vm363 = vcmp.eq.s32.totalorder %v335, %v351
  %vm364 = vcmp.eq.s32.totalorder %v338, %v351
  %vm365 = vcmp.eq.s32.totalorder %v341, %v351
  %vm366 = vcmp.eq.s32.totalorder %v344, %v351
  %vm367 = vcmp.eq.s32.totalorder %v347, %v351
  %v368 = vld [vmem:[%s4] sm:$0x1]
  %vm369 = vcmp.ne.s32.totalorder %v368, 0
  %v370 = vsel %vm369, 1, 0
  %v371 = vlaneseq
  %v372 = vshrl.u32 %v371, 7
  %v373 = vsub.s32 0, %v372
  %v374 = vrot.slane %v370, %v373
  %vm375 = vcmp.eq.s32.totalorder %v374, 1
  %vm376 = vmand %vm352, %vm375
  %vm377 = vmand %vm353, %vm375
  %vm378 = vmand %vm354, %vm375
  %vm379 = vmand %vm355, %vm375
  %vm380 = vmand %vm356, %vm375
  %vm381 = vmand %vm357, %vm375
  %vm382 = vmand %vm358, %vm375
  %vm383 = vmand %vm359, %vm375
  %vm384 = vmand %vm360, %vm375
  %vm385 = vmand %vm361, %vm375
  %vm386 = vmand %vm362, %vm375
  %vm387 = vmand %vm363, %vm375
  %vm388 = vmand %vm364, %vm375
  %vm389 = vmand %vm365, %vm375
  %vm390 = vmand %vm366, %vm375
  %vm391 = vmand %vm367, %vm375
  %vm392 = vmxor %vm375, %vm376
  %vm393 = vmxor %vm375, %vm377
  %vm394 = vmxor %vm375, %vm378
  %vm395 = vmxor %vm375, %vm379
  %vm396 = vmxor %vm375, %vm380
  %vm397 = vmxor %vm375, %vm381
  %vm398 = vmxor %vm375, %vm382
  %vm399 = vmxor %vm375, %vm383
  %vm400 = vmxor %vm375, %vm384
  %vm401 = vmxor %vm375, %vm385
  %vm402 = vmxor %vm375, %vm386
  %vm403 = vmxor %vm375, %vm387
  %vm404 = vmxor %vm375, %vm388
  %vm405 = vmxor %vm375, %vm389
  %vm406 = vmxor %vm375, %vm390
  %vm407 = vmxor %vm375, %vm391
  %v408 = vsel %vm376, %v221, 1.0
  %v409 = vsel %vm377, %v224, 1.0
  %v410 = vsel %vm378, %v229, 1.0
  %v411 = vsel %vm379, %v232, 1.0
  %v412 = vsel %vm380, %v237, 1.0
  %v413 = vsel %vm381, %v240, 1.0
  %v414 = vsel %vm382, %v245, 1.0
  %v415 = vsel %vm383, %v248, 1.0
  %v416 = vsel %vm384, %v253, 1.0
  %v417 = vsel %vm385, %v256, 1.0
  %v418 = vsel %vm386, %v261, 1.0
  %v419 = vsel %vm387, %v264, 1.0
  %v420 = vsel %vm388, %v269, 1.0
  %v421 = vsel %vm389, %v272, 1.0
  %v422 = vsel %vm390, %v277, 1.0
  %v423 = vsel %vm391, %v280, 1.0
  %v424 = vsel %vm392, %v221, -1.0
  %v425 = vsel %vm393, %v224, -1.0
  %v426 = vsel %vm394, %v229, -1.0
  %v427 = vsel %vm395, %v232, -1.0
  %v428 = vsel %vm396, %v237, -1.0
  %v429 = vsel %vm397, %v240, -1.0
  %v430 = vsel %vm398, %v245, -1.0
  %v431 = vsel %vm399, %v248, -1.0
  %v432 = vsel %vm400, %v253, -1.0
  %v433 = vsel %vm401, %v256, -1.0
  %v434 = vsel %vm402, %v261, -1.0
  %v435 = vsel %vm403, %v264, -1.0
  %v436 = vsel %vm404, %v269, -1.0
  %v437 = vsel %vm405, %v272, -1.0
  %v438 = vsel %vm406, %v277, -1.0
  %v439 = vsel %vm407, %v280, -1.0
  %v440 = vld [vmem:[#allocation2] sm:$0xff]
  %v441 = vld [vmem:[#allocation2 + $0x8] sm:$0xff]
  %v442 = vld [vmem:[#allocation2 + $0x10] sm:$0xff]
  %v443 = vld [vmem:[#allocation2 + $0x18] sm:$0xff]
  %v444 = vld [vmem:[#allocation2 + $0x20] sm:$0xff]
  %v445 = vld [vmem:[#allocation2 + $0x28] sm:$0xff]
  %v446 = vld [vmem:[#allocation2 + $0x30] sm:$0xff]
  %v447 = vld [vmem:[#allocation2 + $0x38] sm:$0xff]
  %v448 = vld [vmem:[#allocation2 + $0x40] sm:$0xff]
  %v449 = vld [vmem:[#allocation2 + $0x48] sm:$0xff]
  %v450 = vld [vmem:[#allocation2 + $0x50] sm:$0xff]
  %v451 = vld [vmem:[#allocation2 + $0x58] sm:$0xff]
  %v452 = vld [vmem:[#allocation2 + $0x60] sm:$0xff]
  %v453 = vld [vmem:[#allocation2 + $0x68] sm:$0xff]
  %v454 = vld [vmem:[#allocation2 + $0x70] sm:$0xff]
  %v455 = vld [vmem:[#allocation2 + $0x78] sm:$0xff]
  %456 = vmin.xlane.f32.xlu0 %v408
  %v457 = vpop.xlane.xlu0 %456
  %458 = vmin.xlane.f32.xlu0 %v409
  %v459 = vpop.xlane.xlu0 %458
  %460 = vmin.xlane.f32.xlu0 %v410
  %v461 = vpop.xlane.xlu0 %460
  %462 = vmin.xlane.f32.xlu0 %v411
  %v463 = vpop.xlane.xlu0 %462
  %464 = vmin.xlane.f32.xlu0 %v412
  %v465 = vpop.xlane.xlu0 %464
  %466 = vmin.xlane.f32.xlu0 %v413
  %v467 = vpop.xlane.xlu0 %466
  %468 = vmin.xlane.f32.xlu0 %v414
  %v469 = vpop.xlane.xlu0 %468
  %470 = vmin.xlane.f32.xlu0 %v415
  %v471 = vpop.xlane.xlu0 %470
  %472 = vmin.xlane.f32.xlu0 %v416
  %v473 = vpop.xlane.xlu0 %472
  %474 = vmin.xlane.f32.xlu0 %v417
  %v475 = vpop.xlane.xlu0 %474
  %476 = vmin.xlane.f32.xlu0 %v418
  %v477 = vpop.xlane.xlu0 %476
  %478 = vmin.xlane.f32.xlu0 %v419
  %v479 = vpop.xlane.xlu0 %478
  %480 = vmin.xlane.f32.xlu0 %v420
  %v481 = vpop.xlane.xlu0 %480
  %482 = vmin.xlane.f32.xlu0 %v421
  %v483 = vpop.xlane.xlu0 %482
  %484 = vmin.xlane.f32.xlu0 %v422
  %v485 = vpop.xlane.xlu0 %484
  %486 = vmin.xlane.f32.xlu0 %v423
  %v487 = vpop.xlane.xlu0 %486
  %v488 = vmin.f32 %v440, %v457
  %v489 = vmin.f32 %v441, %v459
  %v490 = vmin.f32 %v442, %v461
  %v491 = vmin.f32 %v443, %v463
  %v492 = vmin.f32 %v444, %v465
  %v493 = vmin.f32 %v445, %v467
  %v494 = vmin.f32 %v446, %v469
  %v495 = vmin.f32 %v447, %v471
  %v496 = vmin.f32 %v448, %v473
  %v497 = vmin.f32 %v449, %v475
  %v498 = vmin.f32 %v450, %v477
  %v499 = vmin.f32 %v451, %v479
  %v500 = vmin.f32 %v452, %v481
  %v501 = vmin.f32 %v453, %v483
  %v502 = vmin.f32 %v454, %v485
  %v503 = vmin.f32 %v455, %v487
  %vm504 = vcmask 7168
  %505 = vst.msk [vmem:[#allocation2] sm:$0xff] %vm504, %v488
  %506 = vst.msk [vmem:[#allocation2 + $0x8] sm:$0xff] %vm504, %v489
  %507 = vst.msk [vmem:[#allocation2 + $0x10] sm:$0xff] %vm504, %v490
  %508 = vst.msk [vmem:[#allocation2 + $0x18] sm:$0xff] %vm504, %v491
  %509 = vst.msk [vmem:[#allocation2 + $0x20] sm:$0xff] %vm504, %v492
  %510 = vst.msk [vmem:[#allocation2 + $0x28] sm:$0xff] %vm504, %v493
  %511 = vst.msk [vmem:[#allocation2 + $0x30] sm:$0xff] %vm504, %v494
  %512 = vst.msk [vmem:[#allocation2 + $0x38] sm:$0xff] %vm504, %v495
  %513 = vst.msk [vmem:[#allocation2 + $0x40] sm:$0xff] %vm504, %v496
  %514 = vst.msk [vmem:[#allocation2 + $0x48] sm:$0xff] %vm504, %v497
  %515 = vst.msk [vmem:[#allocation2 + $0x50] sm:$0xff] %vm504, %v498
  %516 = vst.msk [vmem:[#allocation2 + $0x58] sm:$0xff] %vm504, %v499
  %517 = vst.msk [vmem:[#allocation2 + $0x60] sm:$0xff] %vm504, %v500
  %518 = vst.msk [vmem:[#allocation2 + $0x68] sm:$0xff] %vm504, %v501
  %519 = vst.msk [vmem:[#allocation2 + $0x70] sm:$0xff] %vm504, %v502
  %520 = vst.msk [vmem:[#allocation2 + $0x78] sm:$0xff] %vm504, %v503
  %v521 = vld [vmem:[#allocation3] sm:$0xff]
  %v522 = vld [vmem:[#allocation3 + $0x8] sm:$0xff]
  %v523 = vld [vmem:[#allocation3 + $0x10] sm:$0xff]
  %v524 = vld [vmem:[#allocation3 + $0x18] sm:$0xff]
  %v525 = vld [vmem:[#allocation3 + $0x20] sm:$0xff]
  %v526 = vld [vmem:[#allocation3 + $0x28] sm:$0xff]
  %v527 = vld [vmem:[#allocation3 + $0x30] sm:$0xff]
  %v528 = vld [vmem:[#allocation3 + $0x38] sm:$0xff]
  %v529 = vld [vmem:[#allocation3 + $0x40] sm:$0xff]
  %v530 = vld [vmem:[#allocation3 + $0x48] sm:$0xff]
  %v531 = vld [vmem:[#allocation3 + $0x50] sm:$0xff]
  %v532 = vld [vmem:[#allocation3 + $0x58] sm:$0xff]
  %v533 = vld [vmem:[#allocation3 + $0x60] sm:$0xff]
  %v534 = vld [vmem:[#allocation3 + $0x68] sm:$0xff]
  %v535 = vld [vmem:[#allocation3 + $0x70] sm:$0xff]
  %v536 = vld [vmem:[#allocation3 + $0x78] sm:$0xff]
  %537 = vmax.xlane.f32.xlu0 %v424
  %v538 = vpop.xlane.xlu0 %537
  %539 = vmax.xlane.f32.xlu0 %v425
  %v540 = vpop.xlane.xlu0 %539
  %541 = vmax.xlane.f32.xlu0 %v426
  %v542 = vpop.xlane.xlu0 %541
  %543 = vmax.xlane.f32.xlu0 %v427
  %v544 = vpop.xlane.xlu0 %543
  %545 = vmax.xlane.f32.xlu0 %v428
  %v546 = vpop.xlane.xlu0 %545
  %547 = vmax.xlane.f32.xlu0 %v429
  %v548 = vpop.xlane.xlu0 %547
  %549 = vmax.xlane.f32.xlu0 %v430
  %v550 = vpop.xlane.xlu0 %549
  %551 = vmax.xlane.f32.xlu0 %v431
  %v552 = vpop.xlane.xlu0 %551
  %553 = vmax.xlane.f32.xlu0 %v432
  %v554 = vpop.xlane.xlu0 %553
  %555 = vmax.xlane.f32.xlu0 %v433
  %v556 = vpop.xlane.xlu0 %555
  %557 = vmax.xlane.f32.xlu0 %v434
  %v558 = vpop.xlane.xlu0 %557
  %559 = vmax.xlane.f32.xlu0 %v435
  %v560 = vpop.xlane.xlu0 %559
  %561 = vmax.xlane.f32.xlu0 %v436
  %v562 = vpop.xlane.xlu0 %561
  %563 = vmax.xlane.f32.xlu0 %v437
  %v564 = vpop.xlane.xlu0 %563
  %565 = vmax.xlane.f32.xlu0 %v438
  %v566 = vpop.xlane.xlu0 %565
  %567 = vmax.xlane.f32.xlu0 %v439
  %v568 = vpop.xlane.xlu0 %567
  %v569 = vmax.f32 %v521, %v538
  %v570 = vmax.f32 %v522, %v540
  %v571 = vmax.f32 %v523, %v542
  %v572 = vmax.f32 %v524, %v544
  %v573 = vmax.f32 %v525, %v546
  %v574 = vmax.f32 %v526, %v548
  %v575 = vmax.f32 %v527, %v550
  %v576 = vmax.f32 %v528, %v552
  %v577 = vmax.f32 %v529, %v554
  %v578 = vmax.f32 %v530, %v556
  %v579 = vmax.f32 %v531, %v558
  %v580 = vmax.f32 %v532, %v560
  %v581 = vmax.f32 %v533, %v562
  %v582 = vmax.f32 %v534, %v564
  %v583 = vmax.f32 %v535, %v566
  %v584 = vmax.f32 %v536, %v568
  %585 = vst.msk [vmem:[#allocation3] sm:$0xff] %vm504, %v569
  %586 = vst.msk [vmem:[#allocation3 + $0x8] sm:$0xff] %vm504, %v570
  %587 = vst.msk [vmem:[#allocation3 + $0x10] sm:$0xff] %vm504, %v571
  %588 = vst.msk [vmem:[#allocation3 + $0x18] sm:$0xff] %vm504, %v572
  %589 = vst.msk [vmem:[#allocation3 + $0x20] sm:$0xff] %vm504, %v573
  %590 = vst.msk [vmem:[#allocation3 + $0x28] sm:$0xff] %vm504, %v574
  %591 = vst.msk [vmem:[#allocation3 + $0x30] sm:$0xff] %vm504, %v575
  %592 = vst.msk [vmem:[#allocation3 + $0x38] sm:$0xff] %vm504, %v576
  %593 = vst.msk [vmem:[#allocation3 + $0x40] sm:$0xff] %vm504, %v577
  %594 = vst.msk [vmem:[#allocation3 + $0x48] sm:$0xff] %vm504, %v578
  %595 = vst.msk [vmem:[#allocation3 + $0x50] sm:$0xff] %vm504, %v579
  %596 = vst.msk [vmem:[#allocation3 + $0x58] sm:$0xff] %vm504, %v580
  %597 = vst.msk [vmem:[#allocation3 + $0x60] sm:$0xff] %vm504, %v581
  %598 = vst.msk [vmem:[#allocation3 + $0x68] sm:$0xff] %vm504, %v582
  %599 = vst.msk [vmem:[#allocation3 + $0x70] sm:$0xff] %vm504, %v583
  %600 = vst.msk [vmem:[#allocation3 + $0x78] sm:$0xff] %vm504, %v584
  // Predicated region
  $region26: #{tpu_custom_call.1} parent=0 // pred_check
    %p601 = pneg %p21
  $region27: #{tpu_custom_call.1} parent=0 // pred_check_branch
    %603 = sbr.rel (%p601) target = $region29
  $region28: #{tpu_custom_call.1} parent=0 // pred_region
    %v604 = vld [vmem:[#allocation2] sm:$0xff]
    %v605 = vld [vmem:[#allocation2 + $0x8] sm:$0xff]
    %v606 = vld [vmem:[#allocation2 + $0x10] sm:$0xff]
    %v607 = vld [vmem:[#allocation2 + $0x18] sm:$0xff]
    %v608 = vld [vmem:[#allocation2 + $0x20] sm:$0xff]
    %v609 = vld [vmem:[#allocation2 + $0x28] sm:$0xff]
    %v610 = vld [vmem:[#allocation2 + $0x30] sm:$0xff]
    %v611 = vld [vmem:[#allocation2 + $0x38] sm:$0xff]
    %v612 = vld [vmem:[#allocation2 + $0x40] sm:$0xff]
    %v613 = vld [vmem:[#allocation2 + $0x48] sm:$0xff]
    %v614 = vld [vmem:[#allocation2 + $0x50] sm:$0xff]
    %v615 = vld [vmem:[#allocation2 + $0x58] sm:$0xff]
    %v616 = vld [vmem:[#allocation2 + $0x60] sm:$0xff]
    %v617 = vld [vmem:[#allocation2 + $0x68] sm:$0xff]
    %v618 = vld [vmem:[#allocation2 + $0x70] sm:$0xff]
    %v619 = vld [vmem:[#allocation2 + $0x78] sm:$0xff]
    %v620 = vsub.f32 0.0, %v604
    %v621 = vsub.f32 0.0, %v605
    %v622 = vsub.f32 0.0, %v606
    %v623 = vsub.f32 0.0, %v607
    %v624 = vsub.f32 0.0, %v608
    %v625 = vsub.f32 0.0, %v609
    %v626 = vsub.f32 0.0, %v610
    %v627 = vsub.f32 0.0, %v611
    %v628 = vsub.f32 0.0, %v612
    %v629 = vsub.f32 0.0, %v613
    %v630 = vsub.f32 0.0, %v614
    %v631 = vsub.f32 0.0, %v615
    %v632 = vsub.f32 0.0, %v616
    %v633 = vsub.f32 0.0, %v617
    %v634 = vsub.f32 0.0, %v618
    %v635 = vsub.f32 0.0, %v619
    %v636 = vld [vmem:[#allocation3] sm:$0xff]
    %v637 = vld [vmem:[#allocation3 + $0x8] sm:$0xff]
    %v638 = vld [vmem:[#allocation3 + $0x10] sm:$0xff]
    %v639 = vld [vmem:[#allocation3 + $0x18] sm:$0xff]
    %v640 = vld [vmem:[#allocation3 + $0x20] sm:$0xff]
    %v641 = vld [vmem:[#allocation3 + $0x28] sm:$0xff]
    %v642 = vld [vmem:[#allocation3 + $0x30] sm:$0xff]
    %v643 = vld [vmem:[#allocation3 + $0x38] sm:$0xff]
    %v644 = vld [vmem:[#allocation3 + $0x40] sm:$0xff]
    %v645 = vld [vmem:[#allocation3 + $0x48] sm:$0xff]
    %v646 = vld [vmem:[#allocation3 + $0x50] sm:$0xff]
    %v647 = vld [vmem:[#allocation3 + $0x58] sm:$0xff]
    %v648 = vld [vmem:[#allocation3 + $0x60] sm:$0xff]
    %v649 = vld [vmem:[#allocation3 + $0x68] sm:$0xff]
    %v650 = vld [vmem:[#allocation3 + $0x70] sm:$0xff]
    %v651 = vld [vmem:[#allocation3 + $0x78] sm:$0xff]
    %v652 = vsub.f32 0.0, %v636
    %v653 = vsub.f32 0.0, %v637
    %v654 = vsub.f32 0.0, %v638
    %v655 = vsub.f32 0.0, %v639
    %v656 = vsub.f32 0.0, %v640
    %v657 = vsub.f32 0.0, %v641
    %v658 = vsub.f32 0.0, %v642
    %v659 = vsub.f32 0.0, %v643
    %v660 = vsub.f32 0.0, %v644
    %v661 = vsub.f32 0.0, %v645
    %v662 = vsub.f32 0.0, %v646
    %v663 = vsub.f32 0.0, %v647
    %v664 = vsub.f32 0.0, %v648
    %v665 = vsub.f32 0.0, %v649
    %v666 = vsub.f32 0.0, %v650
    %v667 = vsub.f32 0.0, %v651
    %v668 = vsub.f32 %v620, %v652
    %v669 = vsub.f32 %v621, %v653
    %v670 = vsub.f32 %v622, %v654
    %v671 = vsub.f32 %v623, %v655
    %v672 = vsub.f32 %v624, %v656
    %v673 = vsub.f32 %v625, %v657
    %v674 = vsub.f32 %v626, %v658
    %v675 = vsub.f32 %v627, %v659
    %v676 = vsub.f32 %v628, %v660
    %v677 = vsub.f32 %v629, %v661
    %v678 = vsub.f32 %v630, %v662
    %v679 = vsub.f32 %v631, %v663
    %v680 = vsub.f32 %v632, %v664
    %v681 = vsub.f32 %v633, %v665
    %v682 = vsub.f32 %v634, %v666
    %v683 = vsub.f32 %v635, %v667
    %v684 = vadd.f32 %v668, 0.3
    %v685 = vadd.f32 %v669, 0.3
    %v686 = vadd.f32 %v670, 0.3
    %v687 = vadd.f32 %v671, 0.3
    %v688 = vadd.f32 %v672, 0.3
    %v689 = vadd.f32 %v673, 0.3
    %v690 = vadd.f32 %v674, 0.3
    %v691 = vadd.f32 %v675, 0.3
    %v692 = vadd.f32 %v676, 0.3
    %v693 = vadd.f32 %v677, 0.3
    %v694 = vadd.f32 %v678, 0.3
    %v695 = vadd.f32 %v679, 0.3
    %v696 = vadd.f32 %v680, 0.3
    %v697 = vadd.f32 %v681, 0.3
    %v698 = vadd.f32 %v682, 0.3
    %v699 = vadd.f32 %v683, 0.3
    %v700 = vmax.f32 %v684, 0.0
    %v701 = vmax.f32 %v685, 0.0
    %v702 = vmax.f32 %v686, 0.0
    %v703 = vmax.f32 %v687, 0.0
    %v704 = vmax.f32 %v688, 0.0
    %v705 = vmax.f32 %v689, 0.0
    %v706 = vmax.f32 %v690, 0.0
    %v707 = vmax.f32 %v691, 0.0
    %v708 = vmax.f32 %v692, 0.0
    %v709 = vmax.f32 %v693, 0.0
    %v710 = vmax.f32 %v694, 0.0
    %v711 = vmax.f32 %v695, 0.0
    %v712 = vmax.f32 %v696, 0.0
    %v713 = vmax.f32 %v697, 0.0
    %v714 = vmax.f32 %v698, 0.0
    %v715 = vmax.f32 %v699, 0.0
    %716 = vst.msk [vmem:[%s5] sm:$0xff] %vm504, %v700
    %717 = vst.msk [vmem:[%s5 + $0x8] sm:$0xff] %vm504, %v701
    %718 = vst.msk [vmem:[%s5 + $0x10] sm:$0xff] %vm504, %v702
    %719 = vst.msk [vmem:[%s5 + $0x18] sm:$0xff] %vm504, %v703
    %720 = vst.msk [vmem:[%s5 + $0x20] sm:$0xff] %vm504, %v704
    %721 = vst.msk [vmem:[%s5 + $0x28] sm:$0xff] %vm504, %v705
    %722 = vst.msk [vmem:[%s5 + $0x30] sm:$0xff] %vm504, %v706
    %723 = vst.msk [vmem:[%s5 + $0x38] sm:$0xff] %vm504, %v707
    %724 = vst.msk [vmem:[%s5 + $0x40] sm:$0xff] %vm504, %v708
    %725 = vst.msk [vmem:[%s5 + $0x48] sm:$0xff] %vm504, %v709
    %726 = vst.msk [vmem:[%s5 + $0x50] sm:$0xff] %vm504, %v710
    %727 = vst.msk [vmem:[%s5 + $0x58] sm:$0xff] %vm504, %v711
    %728 = vst.msk [vmem:[%s5 + $0x60] sm:$0xff] %vm504, %v712
    %729 = vst.msk [vmem:[%s5 + $0x68] sm:$0xff] %vm504, %v713
    %730 = vst.msk [vmem:[%s5 + $0x70] sm:$0xff] %vm504, %v714
    %731 = vst.msk [vmem:[%s5 + $0x78] sm:$0xff] %vm504, %v715
  $region29: #{tpu_custom_call.1} parent=0 // pred_fallthru
    _
  // Predicated region
  $region30: #{tpu_custom_call.1} parent=0 // pred_check
    _
  $region31: #{tpu_custom_call.1} parent=0 // pred_check_branch
    %733 = sbr.rel (0) target = $region33
  $region32: #{tpu_custom_call.1} parent=0 // pred_region
    _
  $region33: #{tpu_custom_call.1} parent=0 // pred_fallthru
    _
  // Predicated region
  $region34: #{tpu_custom_call.1} parent=0 // pred_check
    _
  $region35: #{tpu_custom_call.1} parent=0 // pred_check_branch
    %735 = sbr.rel (0) target = $region37
  $region36: #{tpu_custom_call.1} parent=0 // pred_region
    _
  $region37: #{tpu_custom_call.1} parent=0 // pred_fallthru
    _

</llo_original>
